<compile_context>
chip_gen: v6e
topology: v6e:2x2x1
jax: 0.10.0
libtpu: 0.0.40
codegen_flags: <defaults>
</compile_context>

<pallas_src>
import jax
import jax.numpy as jnp
from jax.experimental import pallas as pl
from jax.experimental.pallas import tpu as pltpu

IN_DIM = 267
H_DIM = 36
OUT_DIM = 2


def _round_up(n, m):
    return ((n + m - 1) // m) * m


def nn3_kernel(x_ref, w1_ref, b1_ref, w2_ref, b2_ref, w3d_ref, b3d_ref, o_ref):
    # x tile: (T, 267) bf16; weights bf16; MXU accumulates in f32.
    x = x_ref[...]

    # fc1 + relu
    h1 = jnp.dot(x, w1_ref[...], preferred_element_type=jnp.float32) + b1_ref[...]
    h1 = jnp.maximum(h1, 0.0)

    # fc2 + relu
    h2 = jnp.dot(h1.astype(jnp.bfloat16), w2_ref[...],
                 preferred_element_type=jnp.float32) + b2_ref[...]
    h2 = jnp.maximum(h2, 0.0)

    # fc3 collapsed to the 2-class closed-form log_softmax.
    # d = logit1 - logit0, then:
    #   log_softmax[:, 0] = -softplus(d)
    #   log_softmax[:, 1] =  d - softplus(d)
    d = jnp.dot(h2.astype(jnp.bfloat16), w3d_ref[...],
                preferred_element_type=jnp.float32) + b3d_ref[...]
    # Numerically stable softplus using only exp/log (EUP slot, effectively free).
    sp = jnp.maximum(d, 0.0) + jnp.log(1.0 + jnp.exp(-jnp.abs(d)))
    o_ref[...] = jnp.concatenate([-sp, d - sp], axis=-1)


def nn3_forward(x, params, *, batch_tile=2048):
    w1, b1, w2, b2, w3, b3 = params
    B = x.shape[0]

    # Collapse the 2-class head to a single difference column (log_softmax invariant).
    w3d = w3[:, 1:2] - w3[:, 0:1]   # (H_DIM, 1)
    b3d = b3[:, 1:2] - b3[:, 0:1]   # (1, 1)

    # bf16 inputs/weights (f32 accumulation); biases stay f32.
    xb = x.astype(jnp.bfloat16)
    w1b = w1.astype(jnp.bfloat16)
    w2b = w2.astype(jnp.bfloat16)
    w3db = w3d.astype(jnp.bfloat16)

    # Batch tile: as large as batch_tile, but never larger than the (sublane-rounded)
    # batch. Pad the batch up to a multiple of the tile; padded rows are cheap
    # (zeros through the MLP) and sliced off below.
    tile = min(batch_tile, _round_up(B, 8))
    Bp = _round_up(B, tile)
    if Bp != B:
        xb = jnp.pad(xb, ((0, Bp - B), (0, 0)))
    grid = (Bp // tile,)

    x_spec = pl.BlockSpec((tile, IN_DIM), lambda i: (i, 0))
    out_spec = pl.BlockSpec((tile, OUT_DIM), lambda i: (i, 0))
    # Constant block index -> weights/biases stay resident in VMEM across grid steps.
    full = lambda shape: pl.BlockSpec(shape, lambda i: (0, 0))

    out = pl.pallas_call(
        nn3_kernel,
        out_shape=jax.ShapeDtypeStruct((Bp, OUT_DIM), jnp.float32),
        grid_spec=pltpu.PrefetchScalarGridSpec(
            num_scalar_prefetch=0,
            grid=grid,
            in_specs=[
                x_spec,
                full((IN_DIM, H_DIM)), full((1, H_DIM)),
                full((H_DIM, H_DIM)), full((1, H_DIM)),
                full((H_DIM, 1)), full((1, 1)),
            ],
            out_specs=out_spec,
        ),
        compiler_params=pltpu.CompilerParams(
            dimension_semantics=("parallel",),
            vmem_limit_bytes=32 * 1024 * 1024,
        ),
    )(xb, w1b, b1, w2b, b2, w3db, b3d)

    return out[:B]


def init_params(key):
    # Deterministic init mimicking nn.Linear's uniform(-1/sqrt(fan_in), 1/sqrt(fan_in)).
    def linear(k, fan_in, fan_out):
        kw, kb = jax.random.split(k)
        bound = 1.0 / jnp.sqrt(fan_in)
        # stored as (in, out): transpose of PyTorch's (out, in) weight
        w = jax.random.uniform(kw, (fan_in, fan_out), jnp.float32, -bound, bound)
        b = jax.random.uniform(kb, (1, fan_out), jnp.float32, -bound, bound)
        return w, b

    k1, k2, k3 = jax.random.split(key, 3)
    w1, b1 = linear(k1, IN_DIM, H_DIM)
    w2, b2 = linear(k2, H_DIM, H_DIM)
    w3, b3 = linear(k3, H_DIM, OUT_DIM)
    return w1, b1, w2, b2, w3, b3


def nn3_reference(x, params):
    # Plain-JAX reference mirroring the kernel's bf16-input / f32-accumulate path.
    w1, b1, w2, b2, w3, b3 = params
    xb = x.astype(jnp.bfloat16)
    h1 = jnp.maximum(
        jnp.dot(xb, w1.astype(jnp.bfloat16), preferred_element_type=jnp.float32) + b1, 0.0)
    h2 = jnp.maximum(
        jnp.dot(h1.astype(jnp.bfloat16), w2.astype(jnp.bfloat16),
                preferred_element_type=jnp.float32) + b2, 0.0)
    logits = jnp.dot(h2.astype(jnp.bfloat16), w3.astype(jnp.bfloat16),
                     preferred_element_type=jnp.float32) + b3
    return jax.nn.log_softmax(logits, axis=1)


if __name__ == "__main__":
    key = jax.random.PRNGKey(0)
    kx, kp = jax.random.split(key)

    B = 16  # small demo batch
    x = jax.random.normal(kx, (B, IN_DIM), dtype=jnp.float32)
    params = init_params(kp)

    out = nn3_forward(x, params)
    out = jax.block_until_ready(out)

    ref = nn3_reference(x, params)
    assert out.shape == (B, OUT_DIM)
    # bf16 matmul inputs (f32 accumulation) -> use a bf16-appropriate tolerance.
    assert jnp.allclose(out, ref, atol=2e-2, rtol=2e-2), "mismatch vs reference"

    print("KERNEL_OK")
</pallas_src>

<mosaic_0001>
module attributes {stable_mosaic.version = 11 : i64} {
  func.func @nn3_kernel(%arg0: i32, %arg1: memref<16x267xbf16, #tpu.memory_space<vmem>>, %arg2: memref<267x36xbf16, #tpu.memory_space<vmem>>, %arg3: memref<1x36xf32, #tpu.memory_space<vmem>>, %arg4: memref<36x36xbf16, #tpu.memory_space<vmem>>, %arg5: memref<1x36xf32, #tpu.memory_space<vmem>>, %arg6: memref<36x1xbf16, #tpu.memory_space<vmem>>, %arg7: memref<1x1xf32, #tpu.memory_space<vmem>>, %arg8: memref<16x2xf32, #tpu.memory_space<vmem>>) attributes {dimension_semantics = [#tpu.dimension_semantics<parallel>], iteration_bounds = array<i64: 1>, scalar_prefetch = 0 : i64, scratch_operands = 0 : i64, tpu.core_type = #tpu.core_type<tc>, window_params = [{transform_indices = @transform_0, window_bounds = array<i64: 16, 267>}, {pipeline_mode = #tpu.pipeline_mode<synchronous>, transform_indices = @transform_1, window_bounds = array<i64: 267, 36>}, {pipeline_mode = #tpu.pipeline_mode<synchronous>, transform_indices = @transform_2, window_bounds = array<i64: 1, 36>}, {pipeline_mode = #tpu.pipeline_mode<synchronous>, transform_indices = @transform_3, window_bounds = array<i64: 36, 36>}, {pipeline_mode = #tpu.pipeline_mode<synchronous>, transform_indices = @transform_4, window_bounds = array<i64: 1, 36>}, {pipeline_mode = #tpu.pipeline_mode<synchronous>, transform_indices = @transform_5, window_bounds = array<i64: 36, 1>}, {pipeline_mode = #tpu.pipeline_mode<synchronous>, transform_indices = @transform_6, window_bounds = array<i64: 1, 1>}, {transform_indices = @transform_7, window_bounds = array<i64: 16, 2>}]} {
    %c0 = arith.constant 0 : index
    %c0_0 = arith.constant 0 : index
    %0 = vector.load %arg1[%c0, %c0_0] : memref<16x267xbf16, #tpu.memory_space<vmem>>, vector<16x267xbf16>
    %c0_1 = arith.constant 0 : index
    %c0_2 = arith.constant 0 : index
    %1 = vector.load %arg2[%c0_1, %c0_2] : memref<267x36xbf16, #tpu.memory_space<vmem>>, vector<267x36xbf16>
    %cst = arith.constant dense<0.000000e+00> : vector<16x36xf32>
    %2 = tpu.matmul %0, %1, %cst {dimension_numbers = #tpu.dot_dimension_numbers<[1], [0], [0], [1], [0, 0, 1, 1], [], []>} : vector<16x267xbf16>, vector<267x36xbf16>, vector<16x36xf32> -> vector<16x36xf32>
    %c0_3 = arith.constant 0 : index
    %c0_4 = arith.constant 0 : index
    %3 = vector.load %arg3[%c0_3, %c0_4] : memref<1x36xf32, #tpu.memory_space<vmem>>, vector<1x36xf32>
    %4 = vector.broadcast %3 : vector<1x36xf32> to vector<16x36xf32>
    %5 = arith.addf %2, %4 : vector<16x36xf32>
    %cst_5 = arith.constant 0.000000e+00 : f32
    %6 = vector.broadcast %cst_5 : f32 to vector<16x36xf32>
    %7 = arith.maximumf %5, %6 : vector<16x36xf32>
    %8 = arith.truncf %7 : vector<16x36xf32> to vector<16x36xbf16>
    %c0_6 = arith.constant 0 : index
    %c0_7 = arith.constant 0 : index
    %9 = vector.load %arg4[%c0_6, %c0_7] : memref<36x36xbf16, #tpu.memory_space<vmem>>, vector<36x36xbf16>
    %cst_8 = arith.constant dense<0.000000e+00> : vector<16x36xf32>
    %10 = tpu.matmul %8, %9, %cst_8 {dimension_numbers = #tpu.dot_dimension_numbers<[1], [0], [0], [1], [0, 0, 1, 1], [], []>} : vector<16x36xbf16>, vector<36x36xbf16>, vector<16x36xf32> -> vector<16x36xf32>
    %c0_9 = arith.constant 0 : index
    %c0_10 = arith.constant 0 : index
    %11 = vector.load %arg5[%c0_9, %c0_10] : memref<1x36xf32, #tpu.memory_space<vmem>>, vector<1x36xf32>
    %12 = vector.broadcast %11 : vector<1x36xf32> to vector<16x36xf32>
    %13 = arith.addf %10, %12 : vector<16x36xf32>
    %cst_11 = arith.constant 0.000000e+00 : f32
    %14 = vector.broadcast %cst_11 : f32 to vector<16x36xf32>
    %15 = arith.maximumf %13, %14 : vector<16x36xf32>
    %16 = arith.truncf %15 : vector<16x36xf32> to vector<16x36xbf16>
    %c0_12 = arith.constant 0 : index
    %c0_13 = arith.constant 0 : index
    %17 = vector.load %arg6[%c0_12, %c0_13] : memref<36x1xbf16, #tpu.memory_space<vmem>>, vector<36x1xbf16>
    %cst_14 = arith.constant dense<0.000000e+00> : vector<16x1xf32>
    %18 = tpu.matmul %16, %17, %cst_14 {dimension_numbers = #tpu.dot_dimension_numbers<[1], [0], [0], [1], [0, 0, 1, 1], [], []>} : vector<16x36xbf16>, vector<36x1xbf16>, vector<16x1xf32> -> vector<16x1xf32>
    %c0_15 = arith.constant 0 : index
    %c0_16 = arith.constant 0 : index
    %19 = vector.load %arg7[%c0_15, %c0_16] : memref<1x1xf32, #tpu.memory_space<vmem>>, vector<1x1xf32>
    %20 = vector.broadcast %19 : vector<1x1xf32> to vector<16x1xf32>
    %21 = arith.addf %18, %20 : vector<16x1xf32>
    %cst_17 = arith.constant 0.000000e+00 : f32
    %22 = vector.broadcast %cst_17 : f32 to vector<16x1xf32>
    %23 = arith.maximumf %21, %22 : vector<16x1xf32>
    %24 = math.absf %21 : vector<16x1xf32>
    %cst_18 = arith.constant 0.000000e+00 : f32
    %25 = vector.broadcast %cst_18 : f32 to vector<16x1xf32>
    %26 = arith.subf %25, %24 : vector<16x1xf32>
    %27 = math.exp %26 : vector<16x1xf32>
    %cst_19 = arith.constant 1.000000e+00 : f32
    %28 = vector.broadcast %cst_19 : f32 to vector<16x1xf32>
    %29 = arith.addf %28, %27 : vector<16x1xf32>
    %30 = math.log %29 : vector<16x1xf32>
    %31 = arith.addf %23, %30 : vector<16x1xf32>
    %cst_20 = arith.constant 0.000000e+00 : f32
    %32 = vector.broadcast %cst_20 : f32 to vector<16x1xf32>
    %33 = arith.subf %32, %31 : vector<16x1xf32>
    %34 = arith.subf %21, %31 : vector<16x1xf32>
    %35 = tpu.concatenate %33, %34 in 1 : vector<16x1xf32>, vector<16x1xf32> -> vector<16x2xf32>
    %c0_21 = arith.constant 0 : index
    %c0_22 = arith.constant 0 : index
    %36 = vector.load %arg8[%c0_21, %c0_22] : memref<16x2xf32, #tpu.memory_space<vmem>>, vector<16x2xf32>
    tpu.vector_store %arg8[%c0_21, %c0_22], %35 {strides = array<i32>} : memref<16x2xf32, #tpu.memory_space<vmem>>, vector<16x2xf32>,
    return
  }
  func.func @transform_0(%arg0: i32) -> (i32, i32) {
    %c0_i32 = arith.constant 0 : i32
    %c0_i32_0 = arith.constant 0 : i32
    return %arg0, %c0_i32 : i32, i32
  }
  func.func @transform_1(%arg0: i32) -> (i32, i32) {
    %c0_i32 = arith.constant 0 : i32
    %c0_i32_0 = arith.constant 0 : i32
    %c0_i32_1 = arith.constant 0 : i32
    return %c0_i32, %c0_i32_0 : i32, i32
  }
  func.func @transform_2(%arg0: i32) -> (i32, i32) {
    %c0_i32 = arith.constant 0 : i32
    %c0_i32_0 = arith.constant 0 : i32
    %c0_i32_1 = arith.constant 0 : i32
    return %c0_i32, %c0_i32_0 : i32, i32
  }
  func.func @transform_3(%arg0: i32) -> (i32, i32) {
    %c0_i32 = arith.constant 0 : i32
    %c0_i32_0 = arith.constant 0 : i32
    %c0_i32_1 = arith.constant 0 : i32
    return %c0_i32, %c0_i32_0 : i32, i32
  }
  func.func @transform_4(%arg0: i32) -> (i32, i32) {
    %c0_i32 = arith.constant 0 : i32
    %c0_i32_0 = arith.constant 0 : i32
    %c0_i32_1 = arith.constant 0 : i32
    return %c0_i32, %c0_i32_0 : i32, i32
  }
  func.func @transform_5(%arg0: i32) -> (i32, i32) {
    %c0_i32 = arith.constant 0 : i32
    %c0_i32_0 = arith.constant 0 : i32
    %c0_i32_1 = arith.constant 0 : i32
    return %c0_i32, %c0_i32_0 : i32, i32
  }
  func.func @transform_6(%arg0: i32) -> (i32, i32) {
    %c0_i32 = arith.constant 0 : i32
    %c0_i32_0 = arith.constant 0 : i32
    %c0_i32_1 = arith.constant 0 : i32
    return %c0_i32, %c0_i32_0 : i32, i32
  }
  func.func @transform_7(%arg0: i32) -> (i32, i32) {
    %c0_i32 = arith.constant 0 : i32
    %c0_i32_0 = arith.constant 0 : i32
    return %arg0, %c0_i32 : i32, i32
  }
}

</mosaic_0001>

<llo_original>
// kernel: tpu_custom_call.1
$region0: #{tpu_custom_call.1}
  #allocation0 [shape = 'u32[]', space=smem, size = 0x4, offset = 0x4, fixed_abs, tag = 'smem constant byte address 0x4 - core index']
  #allocation1 [shape = 'u32[144,128]{1,0:T(1,128)}', space=vmem, size = 0x12000, scoped, tag = 'internal scratch']
  #allocation2 [shape = 'f32[1,1]{1,0:T(1,128)S(1)}', space=vmem, size = 0x200, scoped, tag = 'scoped memory for tpu_custom_call.1']
  %s0 = inlined_call_operand.vmem [shape: bf16[16,267], index: 0, kind: input, shape index: {}]
  %s1 = inlined_call_operand.vmem [shape: bf16[267,36], index: 1, kind: input, shape index: {}]
  %s2 = inlined_call_operand.vmem [shape: f32[1,36], index: 2, kind: input, shape index: {}]
  %s3 = inlined_call_operand.vmem [shape: bf16[36,36], index: 3, kind: input, shape index: {}]
  %s4 = inlined_call_operand.vmem [shape: f32[1,36], index: 4, kind: input, shape index: {}]
  %s5 = inlined_call_operand.vmem [shape: bf16[36,1], index: 5, kind: input, shape index: {}]
  %s6 = inlined_call_operand.<no memory space> [shape: f32[1,1], index: 6, kind: input, shape index: {}]
  %s7 = inlined_call_operand.vmem [shape: f32[16,2], index: 7, kind: output, shape index: {}]
  %s8 = sld [smem:[#allocation0]]
  $region38: #{tpu_custom_call.1} parent=0
    _
  %s10 = ssub.s32 1, %s8
  %s11 = scalar_select 0, %s10, %s8
  %v12 = vstv %s6
  %13 = vst [vmem:[#allocation2] sm:$0x1] %v12
  // Predicated region
  $region2: #{tpu_custom_call.1} parent=0 // pred_check
    _
  $region3: #{tpu_custom_call.1} parent=0 // pred_check_branch
    %15 = sbr.rel (0) target = $region5
  $region4: #{tpu_custom_call.1} parent=0 // pred_region
    _
  $region5: #{tpu_custom_call.1} parent=0 // pred_fallthru
    _
  // Predicated region
  $region6: #{tpu_custom_call.1} parent=0 // pred_check
    _
  $region7: #{tpu_custom_call.1} parent=0 // pred_check_branch
    %17 = sbr.rel (0) target = $region9
  $region8: #{tpu_custom_call.1} parent=0 // pred_region
    _
  $region9: #{tpu_custom_call.1} parent=0 // pred_fallthru
    _
  // Predicated region
  $region10: #{tpu_custom_call.1} parent=0 // pred_check
    _
  $region11: #{tpu_custom_call.1} parent=0 // pred_check_branch
    %19 = sbr.rel (0) target = $region13
  $region12: #{tpu_custom_call.1} parent=0 // pred_region
    _
  $region13: #{tpu_custom_call.1} parent=0 // pred_fallthru
    _
  // Predicated region
  $region14: #{tpu_custom_call.1} parent=0 // pred_check
    _
  $region15: #{tpu_custom_call.1} parent=0 // pred_check_branch
    %21 = sbr.rel (0) target = $region17
  $region16: #{tpu_custom_call.1} parent=0 // pred_region
    _
  $region17: #{tpu_custom_call.1} parent=0 // pred_fallthru
    _
  // Predicated region
  $region18: #{tpu_custom_call.1} parent=0 // pred_check
    _
  $region19: #{tpu_custom_call.1} parent=0 // pred_check_branch
    %23 = sbr.rel (0) target = $region21
  $region20: #{tpu_custom_call.1} parent=0 // pred_region
    _
  $region21: #{tpu_custom_call.1} parent=0 // pred_fallthru
    _
  // Predicated region
  $region22: #{tpu_custom_call.1} parent=0 // pred_check
    _
  $region23: #{tpu_custom_call.1} parent=0 // pred_check_branch
    %25 = sbr.rel (0) target = $region25
  $region24: #{tpu_custom_call.1} parent=0 // pred_region
    _
  $region25: #{tpu_custom_call.1} parent=0 // pred_fallthru
    _
  // Predicated region
  $region26: #{tpu_custom_call.1} parent=0 // pred_check
    _
  $region27: #{tpu_custom_call.1} parent=0 // pred_check_branch
    %27 = sbr.rel (0) target = $region29
  $region28: #{tpu_custom_call.1} parent=0 // pred_region
    _
  $region29: #{tpu_custom_call.1} parent=0 // pred_fallthru
    _
  %v29 = vld [vmem:[%s0] sm:$0xff]
  %v30 = vld [vmem:[%s0 + $0x8] sm:$0xf]
  %v31 = vld [vmem:[%s0 + $0xc] sm:$0xff]
  %v32 = vld [vmem:[%s0 + $0x14] sm:$0xf]
  %v33 = vld [vmem:[%s1] sm:$0xf]
  %v34 = vld [vmem:[%s1 + $0x4] sm:$0xf]
  %v35 = vld [vmem:[%s1 + $0x8] sm:$0xf]
  %v36 = vld [vmem:[%s1 + $0xc] sm:$0xf]
  %v37 = vld [vmem:[%s1 + $0x10] sm:$0xf]
  %v38 = vld [vmem:[%s1 + $0x14] sm:$0xf]
  %v39 = vld [vmem:[%s1 + $0x18] sm:$0xf]
  %v40 = vld [vmem:[%s1 + $0x1c] sm:$0xf]
  %v41 = vld [vmem:[%s1 + $0x20] sm:$0xf]
  %v42 = vld [vmem:[%s1 + $0x24] sm:$0xf]
  %v43 = vld [vmem:[%s1 + $0x28] sm:$0xf]
  %v44 = vld [vmem:[%s1 + $0x2c] sm:$0xf]
  %v45 = vld [vmem:[%s1 + $0x30] sm:$0xf]
  %v46 = vld [vmem:[%s1 + $0x34] sm:$0xf]
  %v47 = vld [vmem:[%s1 + $0x38] sm:$0xf]
  %v48 = vld [vmem:[%s1 + $0x3c] sm:$0xf]
  %v49 = vld [vmem:[%s1 + $0x40] sm:$0xf]
  %v50 = vld [vmem:[%s1 + $0x44] sm:$0xf]
  %v51 = vld [vmem:[%s1 + $0x48] sm:$0xf]
  %v52 = vld [vmem:[%s1 + $0x4c] sm:$0xf]
  %v53 = vld [vmem:[%s1 + $0x50] sm:$0xf]
  %v54 = vld [vmem:[%s1 + $0x54] sm:$0xf]
  %v55 = vld [vmem:[%s1 + $0x58] sm:$0xf]
  %v56 = vld [vmem:[%s1 + $0x5c] sm:$0xf]
  %v57 = vld [vmem:[%s1 + $0x60] sm:$0xf]
  %v58 = vld [vmem:[%s1 + $0x64] sm:$0xf]
  %v59 = vld [vmem:[%s1 + $0x68] sm:$0xf]
  %v60 = vld [vmem:[%s1 + $0x6c] sm:$0xf]
  %v61 = vld [vmem:[%s1 + $0x70] sm:$0xf]
  %v62 = vld [vmem:[%s1 + $0x74] sm:$0xf]
  %v63 = vld [vmem:[%s1 + $0x78] sm:$0xf]
  %v64 = vld [vmem:[%s1 + $0x7c] sm:$0xf]
  %v65 = vld [vmem:[%s1 + $0x80] sm:$0xf]
  %v66 = vld [vmem:[%s1 + $0x84] sm:$0x3]
  %v67 = vld [vmem:[%s2] sm:$0x1]
  %v69 = vlaneseq
  %v70 = vshrl.u32 %v69, 7
  %v71 = vsub.s32 0, %v70
  %v72 = vrot.slane %v67, %v71
  %v78 = vunpack.c.l.b16 %v29
  %v79 = vunpack.c.h.b16 %v29
  %v80 = vunpack.c.l.b16 %v30
  %v81 = vunpack.c.l.b16 %v31
  %v82 = vunpack.c.h.b16 %v31
  %v83 = vunpack.c.l.b16 %v32
  %v84 = vpack.c.b16 %v81, %v78
  %v85 = vpack.c.b16 %v82, %v79
  %v86 = vpack.c.b16 %v83, %v80
  %v123 = vunpack.c.l.b16 %v33
  %v124 = vunpack.c.l.b16 %v34
  %v125 = vunpack.c.l.b16 %v35
  %v126 = vunpack.c.l.b16 %v36
  %v127 = vunpack.c.l.b16 %v37
  %v128 = vunpack.c.l.b16 %v38
  %v129 = vunpack.c.l.b16 %v39
  %v130 = vunpack.c.l.b16 %v40
  %v131 = vunpack.c.l.b16 %v41
  %v132 = vunpack.c.l.b16 %v42
  %v133 = vunpack.c.l.b16 %v43
  %v134 = vunpack.c.l.b16 %v44
  %v135 = vunpack.c.l.b16 %v45
  %v136 = vunpack.c.l.b16 %v46
  %v137 = vunpack.c.l.b16 %v47
  %v138 = vunpack.c.l.b16 %v48
  %v139 = vunpack.c.l.b16 %v49
  %v140 = vunpack.c.l.b16 %v50
  %v141 = vunpack.c.l.b16 %v51
  %v142 = vunpack.c.l.b16 %v52
  %v143 = vunpack.c.l.b16 %v53
  %v144 = vunpack.c.l.b16 %v54
  %v145 = vunpack.c.l.b16 %v55
  %v146 = vunpack.c.l.b16 %v56
  %v147 = vunpack.c.l.b16 %v57
  %v148 = vunpack.c.l.b16 %v58
  %v149 = vunpack.c.l.b16 %v59
  %v150 = vunpack.c.l.b16 %v60
  %v151 = vunpack.c.l.b16 %v61
  %v152 = vunpack.c.l.b16 %v62
  %v153 = vunpack.c.l.b16 %v63
  %v154 = vunpack.c.l.b16 %v64
  %v155 = vunpack.c.l.b16 %v65
  %v156 = vunpack.c.l.b16 %v66
  %v157 = vpack.c.b16 %v124, %v123
  %v158 = vpack.c.b16 %v126, %v125
  %v159 = vpack.c.b16 %v128, %v127
  %v160 = vpack.c.b16 %v130, %v129
  %v161 = vpack.c.b16 %v132, %v131
  %v162 = vpack.c.b16 %v134, %v133
  %v163 = vpack.c.b16 %v136, %v135
  %v164 = vpack.c.b16 %v138, %v137
  %v165 = vpack.c.b16 %v140, %v139
  %v166 = vpack.c.b16 %v142, %v141
  %v167 = vpack.c.b16 %v144, %v143
  %v168 = vpack.c.b16 %v146, %v145
  %v169 = vpack.c.b16 %v148, %v147
  %v170 = vpack.c.b16 %v150, %v149
  %v171 = vpack.c.b16 %v152, %v151
  %v172 = vpack.c.b16 %v154, %v153
  %v173 = vpack.c.b16 %v156, %v155
  %vm190 = vcmask 89088
  %v192 = vsel %vm190, %v86, 0
  %vm194 = vcmask 1044480
  %vm195 = vcmask 1045504
  %v196 = vsel %vm194, 4294967295, 65535
  %v197 = vsel %vm195, %v196, 0
  %v199 = vand.u32 %v173, %v197
  %201 = vmatprep.subr.bf16.mxu0 0
  %202 = vmatpush1.bf16.msra.mxu0 %v164
  %203 = vmatprep.subr.bf16.mxu0 0
  %204 = vmatpush1.bf16.msra.mxu0 %v163
  %205 = vmatprep.subr.bf16.mxu0 0
  %206 = vmatpush1.bf16.msra.mxu0 %v162
  %207 = vmatprep.subr.bf16.mxu0 0
  %208 = vmatpush1.bf16.msra.mxu0 %v161
  %209 = vmatprep.subr.bf16.mxu0 0
  %210 = vmatpush1.bf16.msra.mxu0 %v160
  %211 = vmatprep.subr.bf16.mxu0 0
  %212 = vmatpush1.bf16.msra.mxu0 %v159
  %213 = vmatprep.subr.bf16.mxu0 0
  %214 = vmatpush1.bf16.msra.mxu0 %v158
  %215 = vmatprep.subr.bf16.mxu0 0
  %216 = vmatpush1.bf16.msra.mxu0 %v157
  %217 = vmatprep.subr.bf16.mxu0 0
  %218 = vmatpush2.bf16.msra.mxu0 %v172
  %219 = vmatprep.subr.bf16.mxu0 0
  %220 = vmatpush2.bf16.msra.mxu0 %v171
  %221 = vmatprep.subr.bf16.mxu0 0
  %222 = vmatpush2.bf16.msra.mxu0 %v170
  %223 = vmatprep.subr.bf16.mxu0 0
  %224 = vmatpush2.bf16.msra.mxu0 %v169
  %225 = vmatprep.subr.bf16.mxu0 0
  %226 = vmatpush2.bf16.msra.mxu0 %v168
  %227 = vmatprep.subr.bf16.mxu0 0
  %228 = vmatpush2.bf16.msra.mxu0 %v167
  %229 = vmatprep.subr.bf16.mxu0 0
  %230 = vmatpush2.bf16.msra.mxu0 %v166
  %231 = vmatprep.subr.bf16.mxu0 0
  %232 = vmatpush2.bf16.msra.mxu0 %v165
  %233 = vmatprep.mubr.bf16.mxu0 %v85
  %234 = vmatmul.mubr.bf16.gmra.mxu0 %v84
  %v235 = vpop.f32.mrf.mxu0
  %v236 = vadd.f32 %v72, %v235
  %v237 = vpop.f32.mrf.mxu0
  %v238 = vpop.f32.mrf.mxu0
  %v239 = vadd.f32 %v72, %v238
  %v240 = vpop.f32.mrf.mxu0
  %241 = vdwg.mxu0
  %242 = vmatprep.subr.bf16.mxu0 0
  %243 = vmatpush1.bf16.msra.mxu0 0
  %244 = vmatprep.subr.bf16.mxu0 0
  %245 = vmatpush1.bf16.msra.mxu0 0
  %246 = vmatprep.subr.bf16.mxu0 0
  %247 = vmatpush1.bf16.msra.mxu0 0
  %248 = vmatprep.subr.bf16.mxu0 0
  %249 = vmatpush1.bf16.msra.mxu0 0
  %250 = vmatprep.subr.bf16.mxu0 0
  %251 = vmatpush1.bf16.msra.mxu0 0
  %252 = vmatprep.subr.bf16.mxu0 0
  %253 = vmatpush1.bf16.msra.mxu0 0
  %254 = vmatprep.subr.bf16.mxu0 0
  %255 = vmatpush1.bf16.msra.mxu0 0
  %256 = vmatprep.subr.bf16.mxu0 0
  %257 = vmatpush1.bf16.msra.mxu0 %v199
  %258 = vmatprep.subr.bf16.mxu0 0
  %259 = vmatpush2.bf16.msra.mxu0 0
  %260 = vmatprep.subr.bf16.mxu0 0
  %261 = vmatpush2.bf16.msra.mxu0 0
  %262 = vmatprep.subr.bf16.mxu0 0
  %263 = vmatpush2.bf16.msra.mxu0 0
  %264 = vmatprep.subr.bf16.mxu0 0
  %265 = vmatpush2.bf16.msra.mxu0 0
  %266 = vmatprep.subr.bf16.mxu0 0
  %267 = vmatpush2.bf16.msra.mxu0 0
  %268 = vmatprep.subr.bf16.mxu0 0
  %269 = vmatpush2.bf16.msra.mxu0 0
  %270 = vmatprep.subr.bf16.mxu0 0
  %271 = vmatpush2.bf16.msra.mxu0 0
  %272 = vmatprep.subr.bf16.mxu0 0
  %273 = vmatpush2.bf16.msra.mxu0 0
  %274 = vmatprep.mubr.bf16.mxu0 0
  %275 = vmatmul.mubr.bf16.gmra.mxu0 %v192
  %v276 = vpop.f32.mrf.mxu0
  %v277 = vadd.f32 %v236, %v276
  %v278 = vpop.f32.mrf.mxu0
  %v279 = vpop.f32.mrf.mxu0
  %v280 = vadd.f32 %v239, %v279
  %v281 = vpop.f32.mrf.mxu0
  %282 = vdwg.mxu0
  %v283 = vmax.f32 %v277, 0.0
  %v284 = vmax.f32 %v280, 0.0
  %v285 = vpack.c.bf16 %v284, %v283
  %v286 = vld [vmem:[%s3] sm:$0xf]
  %v287 = vld [vmem:[%s3 + $0x4] sm:$0xf]
  %v288 = vld [vmem:[%s3 + $0x8] sm:$0xf]
  %v289 = vld [vmem:[%s3 + $0xc] sm:$0xf]
  %v290 = vld [vmem:[%s3 + $0x10] sm:$0x3]
  %v291 = vld [vmem:[%s4] sm:$0x1]
  %v293 = vlaneseq
  %v294 = vshrl.u32 %v293, 7
  %v295 = vsub.s32 0, %v294
  %v296 = vrot.slane %v291, %v295
  %v303 = vunpack.c.l.b16 %v286
  %v304 = vunpack.c.l.b16 %v287
  %v305 = vunpack.c.l.b16 %v288
  %v306 = vunpack.c.l.b16 %v289
  %v307 = vunpack.c.l.b16 %v290
  %v308 = vpack.c.b16 %v304, %v303
  %v309 = vpack.c.b16 %v306, %v305
  %v310 = vpack.c.b16 %v307, %v307
  %vm313 = vcmask 293888
  %v315 = vsel %vm313, %v285, 0
  %vm317 = vcmask 1041408
  %v319 = vsel %vm317, %v310, 0
  %321 = vmatprep.subr.bf16.mxu0 0
  %322 = vmatpush1.bf16.msra.mxu0 0
  %323 = vmatprep.subr.bf16.mxu0 0
  %324 = vmatpush1.bf16.msra.mxu0 0
  %325 = vmatprep.subr.bf16.mxu0 0
  %326 = vmatpush1.bf16.msra.mxu0 0
  %327 = vmatprep.subr.bf16.mxu0 0
  %328 = vmatpush1.bf16.msra.mxu0 0
  %329 = vmatprep.subr.bf16.mxu0 0
  %330 = vmatpush1.bf16.msra.mxu0 0
  %331 = vmatprep.subr.bf16.mxu0 0
  %332 = vmatpush1.bf16.msra.mxu0 %v319
  %333 = vmatprep.subr.bf16.mxu0 0
  %334 = vmatpush1.bf16.msra.mxu0 %v309
  %335 = vmatprep.subr.bf16.mxu0 0
  %336 = vmatpush1.bf16.msra.mxu0 %v308
  %337 = vmatprep.subr.bf16.mxu0 0
  %338 = vmatpush2.bf16.msra.mxu0 0
  %339 = vmatprep.subr.bf16.mxu0 0
  %340 = vmatpush2.bf16.msra.mxu0 0
  %341 = vmatprep.subr.bf16.mxu0 0
  %342 = vmatpush2.bf16.msra.mxu0 0
  %343 = vmatprep.subr.bf16.mxu0 0
  %344 = vmatpush2.bf16.msra.mxu0 0
  %345 = vmatprep.subr.bf16.mxu0 0
  %346 = vmatpush2.bf16.msra.mxu0 0
  %347 = vmatprep.subr.bf16.mxu0 0
  %348 = vmatpush2.bf16.msra.mxu0 0
  %349 = vmatprep.subr.bf16.mxu0 0
  %350 = vmatpush2.bf16.msra.mxu0 0
  %351 = vmatprep.subr.bf16.mxu0 0
  %352 = vmatpush2.bf16.msra.mxu0 0
  %353 = vmatprep.mubr.bf16.mxu0 0
  %354 = vmatmul.mubr.bf16.gmra.mxu0 %v315
  %v355 = vpop.f32.mrf.mxu0
  %v356 = vadd.f32 %v296, %v355
  %v357 = vpop.f32.mrf.mxu0
  %v358 = vpop.f32.mrf.mxu0
  %v359 = vadd.f32 %v296, %v358
  %v360 = vpop.f32.mrf.mxu0
  %361 = vdwg.mxu0
  %v362 = vmax.f32 %v356, 0.0
  %v363 = vmax.f32 %v359, 0.0
  %v364 = vpack.c.bf16 %v363, %v362
  %v365 = vld [vmem:[%s5] sm:$0xf]
  %v366 = vld [vmem:[%s5 + $0x4] sm:$0xf]
  %v367 = vld [vmem:[%s5 + $0x8] sm:$0xf]
  %v368 = vld [vmem:[%s5 + $0xc] sm:$0xf]
  %v369 = vld [vmem:[%s5 + $0x10] sm:$0x3]
  %v370 = vld [vmem:[#allocation2] sm:$0x1]
  %v372 = vlaneseq
  %v373 = vshrl.u32 %v372, 7
  %v374 = vsub.s32 0, %v373
  %v375 = vrot.slane %v370, %v374
  %v382 = vunpack.c.l.b16 %v365
  %v383 = vunpack.c.l.b16 %v366
  %v384 = vunpack.c.l.b16 %v367
  %v385 = vunpack.c.l.b16 %v368
  %v386 = vunpack.c.l.b16 %v369
  %v387 = vpack.c.b16 %v383, %v382
  %v388 = vpack.c.b16 %v385, %v384
  %v389 = vpack.c.b16 %v386, %v386
  %v393 = vsel %vm313, %v364, 0
  %v396 = vsel %vm317, %v389, 0
  %398 = vmatprep.subr.bf16.mxu0 0
  %399 = vmatpush1.bf16.msra.mxu0 0
  %400 = vmatprep.subr.bf16.mxu0 0
  %401 = vmatpush1.bf16.msra.mxu0 0
  %402 = vmatprep.subr.bf16.mxu0 0
  %403 = vmatpush1.bf16.msra.mxu0 0
  %404 = vmatprep.subr.bf16.mxu0 0
  %405 = vmatpush1.bf16.msra.mxu0 0
  %406 = vmatprep.subr.bf16.mxu0 0
  %407 = vmatpush1.bf16.msra.mxu0 0
  %408 = vmatprep.subr.bf16.mxu0 0
  %409 = vmatpush1.bf16.msra.mxu0 %v396
  %410 = vmatprep.subr.bf16.mxu0 0
  %411 = vmatpush1.bf16.msra.mxu0 %v388
  %412 = vmatprep.subr.bf16.mxu0 0
  %413 = vmatpush1.bf16.msra.mxu0 %v387
  %414 = vmatprep.subr.bf16.mxu0 0
  %415 = vmatpush2.bf16.msra.mxu0 0
  %416 = vmatprep.subr.bf16.mxu0 0
  %417 = vmatpush2.bf16.msra.mxu0 0
  %418 = vmatprep.subr.bf16.mxu0 0
  %419 = vmatpush2.bf16.msra.mxu0 0
  %420 = vmatprep.subr.bf16.mxu0 0
  %421 = vmatpush2.bf16.msra.mxu0 0
  %422 = vmatprep.subr.bf16.mxu0 0
  %423 = vmatpush2.bf16.msra.mxu0 0
  %424 = vmatprep.subr.bf16.mxu0 0
  %425 = vmatpush2.bf16.msra.mxu0 0
  %426 = vmatprep.subr.bf16.mxu0 0
  %427 = vmatpush2.bf16.msra.mxu0 0
  %428 = vmatprep.subr.bf16.mxu0 0
  %429 = vmatpush2.bf16.msra.mxu0 0
  %430 = vmatprep.mubr.bf16.mxu0 0
  %431 = vmatmul.mubr.bf16.gmra.mxu0 %v393
  %v432 = vpop.f32.mrf.mxu0
  %v433 = vadd.f32 %v375, %v432
  %v434 = vpop.f32.mrf.mxu0
  %v435 = vpop.f32.mrf.mxu0
  %v436 = vadd.f32 %v375, %v435
  %v437 = vpop.f32.mrf.mxu0
  %438 = vdwg.mxu0
  %v439 = vmax.f32 %v433, 0.0
  %v440 = vmax.f32 %v436, 0.0
  %v441 = vand.u32 2147483647, %v433
  %v442 = vand.u32 2147483647, %v436
  %v443 = vsub.f32 0.0, %v441
  %v444 = vsub.f32 0.0, %v442
  %v445 = vmul.f32 %v443, 1.442695
  %v446 = vpow.pop %v445
  %v447 = vmul.f32 %v444, 1.442695
  %v448 = vpow.pop %v447
  %v449 = vadd.f32 %v446, 1.0
  %v450 = vadd.f32 %v448, 1.0
  %v451 = vlog2.pop %v449
  %v452 = vmul.f32 %v451, 0.6931472
  %v453 = vlog2.pop %v450
  %v454 = vmul.f32 %v453, 0.6931472
  %v455 = vadd.f32 %v439, %v452
  %v456 = vadd.f32 %v440, %v454
  %v457 = vsub.f32 0.0, %v455
  %v458 = vsub.f32 0.0, %v456
  %v459 = vsub.f32 %v433, %v455
  %v460 = vsub.f32 %v436, %v456
  %463 = vrot.lane.b32.xlu0 %v459, 1
  %v464 = vpop.permute.xlu0 %463
  %465 = vrot.lane.b32.xlu0 %v460, 1
  %v466 = vpop.permute.xlu0 %465
  %vm469 = vcmask 7168
  %v470 = vsel %vm469, %v457, %v464
  %v471 = vsel %vm469, %v458, %v466
  %vm472 = vcmask 15360
  %473 = vst.msk [vmem:[%s7] sm:$0xff] %vm472, %v470
  %474 = vst.msk [vmem:[%s7 + $0x8] sm:$0xff] %vm472, %v471
  // Predicated region
  $region30: #{tpu_custom_call.1} parent=0 // pred_check
    _
  $region31: #{tpu_custom_call.1} parent=0 // pred_check_branch
    %476 = sbr.rel (0) target = $region33
  $region32: #{tpu_custom_call.1} parent=0 // pred_region
    _
  $region33: #{tpu_custom_call.1} parent=0 // pred_fallthru
    _
  // Predicated region
  $region34: #{tpu_custom_call.1} parent=0 // pred_check
    _
  $region35: #{tpu_custom_call.1} parent=0 // pred_check_branch
    %478 = sbr.rel (0) target = $region37
  $region36: #{tpu_custom_call.1} parent=0 // pred_region
    _
  $region37: #{tpu_custom_call.1} parent=0 // pred_fallthru
    _

</llo_original>
